<compile_context>
chip_gen: v7x
topology: tpu7x:2x2x1
jax: 0.10.0
libtpu: 0.0.40
codegen_flags: <defaults>
</compile_context>

<pallas_src>
import functools

import jax
import jax.numpy as jnp
from jax.experimental import pallas as pl
from jax.experimental.pallas import tpu as pltpu


# ----------------------------- Fused Pallas kernel ---------------------------
def _fused_mlp_kernel(x_ref, params_ref, o_ref, *, num_hidden: int, p: int):
    """Chains (h @ W + b) -> ReLU for each hidden layer, then the readout
    (h @ W + b) with no ReLU, entirely in VMEM/vregs.

    params_ref layout: one block of (p + 8) rows per layer, concatenated:
      row 0              : bias (zero-padded to p lanes)
      rows 1..7          : zeros (sublane alignment)
      rows 8..8+p-1      : W, zero-padded to (p, p)
    All slices below are static and sublane-aligned.
    """
    block_rows = p + 8
    h = x_ref[...].astype(jnp.float32)            # (B, p), lane-padded
    n_layers = num_hidden + 1                     # hidden layers + readout
    for i in range(n_layers):
        off = i * block_rows
        b = params_ref[off:off + 1, :]            # (1, p) broadcasts over rows
        w = params_ref[off + 8:off + 8 + p, :]    # (p, p)
        y = jnp.dot(h, w, preferred_element_type=jnp.float32) + b
        if i < num_hidden:                        # ReLU on hidden layers only
            y = jnp.maximum(y, 0.0)
        h = y
    o_ref[...] = h.astype(o_ref.dtype)


@functools.partial(jax.jit, static_argnames=("num_hidden", "p", "outp_dim"))
def dense_net_forward(x, packed_params, *, num_hidden: int, p: int, outp_dim: int):
    """Full MLP forward in a single pallas_call (2 operands, 1 output).

    x:              (B, inp_dim) float32
    packed_params:  ((num_hidden+1)*(p+8), p) float32 slab from pack_dense_net_params
    Returns (B, outp_dim).
    """
    B, din = x.shape
    # Lane-pad the activation once (exact: padded columns hit zero weight rows).
    x_pad = jnp.zeros((B, p), jnp.float32).at[:, :din].set(x.astype(jnp.float32))

    kernel = functools.partial(_fused_mlp_kernel, num_hidden=num_hidden, p=p)
    out_pad = pl.pallas_call(
        kernel,
        out_shape=jax.ShapeDtypeStruct((B, p), jnp.float32),
        in_specs=[
            pl.BlockSpec(memory_space=pltpu.MemorySpace.VMEM),   # x (full block)
            pl.BlockSpec(memory_space=pltpu.MemorySpace.VMEM),   # packed params
        ],
        out_specs=pl.BlockSpec(memory_space=pltpu.MemorySpace.VMEM),
        # 32 MiB is safely within every generation's scoped VMEM budget
        # (v5e/v6e: 128 MiB physical; v7x: 64 MiB physical).  The slab here is
        # ~200 KiB; past ~24 MiB resident on v7x, stream weights per layer.
        compiler_params=pltpu.CompilerParams(vmem_limit_bytes=32 * 1024 * 1024),
    )(x_pad, packed_params)
    return out_pad[:, :outp_dim]


# --------------------------- Parameter construction --------------------------
def init_dense_net_params(key, inp_dim, hidden_dims, outp_dim):
    """Matches the PyTorch module: kaiming_normal_ (std = sqrt(2 / fan_in)) on
    every weight INCLUDING the readout (as the spec does), default nn.Linear
    bias init (uniform in [-1/sqrt(fan_in), 1/sqrt(fan_in)]).
    Weights stored (D_in, D_out) so the kernel computes y = x @ W + b.
    """
    dims_in = [inp_dim] + list(hidden_dims[:-1])
    dims_out = list(hidden_dims)
    params = []
    for din, dout in zip(dims_in, dims_out):
        key, kw, kb = jax.random.split(key, 3)
        w = jax.random.normal(kw, (din, dout), jnp.float32) * jnp.sqrt(2.0 / din)
        bound = 1.0 / jnp.sqrt(din)
        b = jax.random.uniform(kb, (dout,), jnp.float32, -bound, bound)
        params.append((w, b))
    rd_in = hidden_dims[-1] if len(hidden_dims) > 0 else inp_dim
    key, kw, kb = jax.random.split(key, 3)
    w_ro = jax.random.normal(kw, (rd_in, outp_dim), jnp.float32) * jnp.sqrt(2.0 / rd_in)
    bound = 1.0 / jnp.sqrt(rd_in)
    b_ro = jax.random.uniform(kb, (outp_dim,), jnp.float32, -bound, bound)
    return params, (w_ro, b_ro)


def pack_dense_net_params(hidden_params, readout_params, p):
    """Pack all (W, b) into one lane-padded f32 slab, built ONCE at init.

    Per-layer block of (p + 8) rows x p lanes:
      row 0      -> bias (zero-padded)
      rows 1..7  -> zeros (keeps the next block's W slice sublane-aligned)
      rows 8..   -> W (din, dout) zero-padded to (p, p)
    """
    all_params = list(hidden_params) + [readout_params]
    blocks = []
    for w, b in all_params:
        din, dout = w.shape
        assert din <= p and dout <= p, "layer wider than pad width; raise p"
        blk = jnp.zeros((p + 8, p), jnp.float32)
        blk = blk.at[0, :dout].set(b.reshape(-1))
        blk = blk.at[8:8 + din, :dout].set(w)
        blocks.append(blk)
    return jnp.concatenate(blocks, axis=0)


# ---------------------------------- Main --------------------------------------
if __name__ == "__main__":
    # Small shapes consistent with the module:
    #   model_inp_dim=32, model_hidden_dims=[64, 32], model_outp_dim=16, batch=2
    batch = 2
    inp_dim = 32
    hidden_dims = [64, 32]
    outp_dim = 16

    max_dim = max([inp_dim, outp_dim] + list(hidden_dims))
    p = 128 * pl.cdiv(max_dim, 128)               # lane-padded width (=128 here)

    key = jax.random.PRNGKey(0)
    key, kx = jax.random.split(key)
    x = jax.random.normal(kx, (batch, inp_dim), jnp.float32)

    hidden_params, readout_params = init_dense_net_params(
        key, inp_dim, hidden_dims, outp_dim
    )
    packed_params = pack_dense_net_params(hidden_params, readout_params, p)
    packed_params = jax.block_until_ready(packed_params)

    out = dense_net_forward(
        x, packed_params,
        num_hidden=len(hidden_dims), p=p, outp_dim=outp_dim,
    )
    out = jax.block_until_ready(out)

    # Reference in plain JAX (same math): x -> (linear+relu)* -> linear
    ref = x
    for w, b in hidden_params:
        ref = jnp.maximum(ref @ w + b, 0.0)
    ref = ref @ readout_params[0] + readout_params[1]

    assert out.shape == (batch, outp_dim)
    assert jnp.allclose(out, ref, atol=1e-3, rtol=1e-3)

    print("KERNEL_OK")
</pallas_src>

<mosaic_0001>
module attributes {stable_mosaic.version = 11 : i64} {
  func.func @_fused_mlp_kernel(%arg0: memref<2x128xf32, #tpu.memory_space<vmem>>, %arg1: memref<408x128xf32, #tpu.memory_space<vmem>>, %arg2: memref<2x128xf32, #tpu.memory_space<vmem>>) attributes {dimension_semantics = [], scalar_prefetch = 0 : i64, scratch_operands = 0 : i64, tpu.core_type = #tpu.core_type<tc>} {
    %c0 = arith.constant 0 : index
    %c0_0 = arith.constant 0 : index
    %0 = vector.load %arg0[%c0, %c0_0] : memref<2x128xf32, #tpu.memory_space<vmem>>, vector<2x128xf32>
    %c0_1 = arith.constant 0 : index
    %c0_2 = arith.constant 0 : index
    %1 = vector.load %arg1[%c0_1, %c0_2] : memref<408x128xf32, #tpu.memory_space<vmem>>, vector<1x128xf32>
    %c8 = arith.constant 8 : index
    %c0_3 = arith.constant 0 : index
    %2 = vector.load %arg1[%c8, %c0_3] : memref<408x128xf32, #tpu.memory_space<vmem>>, vector<128x128xf32>
    %cst = arith.constant dense<0.000000e+00> : vector<2x128xf32>
    %3 = tpu.matmul %0, %2, %cst {dimension_numbers = #tpu.dot_dimension_numbers<[1], [0], [0], [1], [0, 0, 1, 1], [], []>} : vector<2x128xf32>, vector<128x128xf32>, vector<2x128xf32> -> vector<2x128xf32>
    %4 = vector.broadcast %1 : vector<1x128xf32> to vector<2x128xf32>
    %5 = arith.addf %3, %4 : vector<2x128xf32>
    %cst_4 = arith.constant 0.000000e+00 : f32
    %6 = vector.broadcast %cst_4 : f32 to vector<2x128xf32>
    %7 = arith.maximumf %5, %6 : vector<2x128xf32>
    %c136 = arith.constant 136 : index
    %c0_5 = arith.constant 0 : index
    %8 = vector.load %arg1[%c136, %c0_5] : memref<408x128xf32, #tpu.memory_space<vmem>>, vector<1x128xf32>
    %c144 = arith.constant 144 : index
    %c0_6 = arith.constant 0 : index
    %9 = vector.load %arg1[%c144, %c0_6] : memref<408x128xf32, #tpu.memory_space<vmem>>, vector<128x128xf32>
    %cst_7 = arith.constant dense<0.000000e+00> : vector<2x128xf32>
    %10 = tpu.matmul %7, %9, %cst_7 {dimension_numbers = #tpu.dot_dimension_numbers<[1], [0], [0], [1], [0, 0, 1, 1], [], []>} : vector<2x128xf32>, vector<128x128xf32>, vector<2x128xf32> -> vector<2x128xf32>
    %11 = vector.broadcast %8 : vector<1x128xf32> to vector<2x128xf32>
    %12 = arith.addf %10, %11 : vector<2x128xf32>
    %cst_8 = arith.constant 0.000000e+00 : f32
    %13 = vector.broadcast %cst_8 : f32 to vector<2x128xf32>
    %14 = arith.maximumf %12, %13 : vector<2x128xf32>
    %c272 = arith.constant 272 : index
    %c0_9 = arith.constant 0 : index
    %15 = vector.load %arg1[%c272, %c0_9] : memref<408x128xf32, #tpu.memory_space<vmem>>, vector<1x128xf32>
    %c280 = arith.constant 280 : index
    %c0_10 = arith.constant 0 : index
    %16 = vector.load %arg1[%c280, %c0_10] : memref<408x128xf32, #tpu.memory_space<vmem>>, vector<128x128xf32>
    %cst_11 = arith.constant dense<0.000000e+00> : vector<2x128xf32>
    %17 = tpu.matmul %14, %16, %cst_11 {dimension_numbers = #tpu.dot_dimension_numbers<[1], [0], [0], [1], [0, 0, 1, 1], [], []>} : vector<2x128xf32>, vector<128x128xf32>, vector<2x128xf32> -> vector<2x128xf32>
    %18 = vector.broadcast %15 : vector<1x128xf32> to vector<2x128xf32>
    %19 = arith.addf %17, %18 : vector<2x128xf32>
    %c0_12 = arith.constant 0 : index
    %c0_13 = arith.constant 0 : index
    %20 = vector.load %arg2[%c0_12, %c0_13] : memref<2x128xf32, #tpu.memory_space<vmem>>, vector<2x128xf32>
    tpu.vector_store %arg2[%c0_12, %c0_13], %19 {strides = array<i32>} : memref<2x128xf32, #tpu.memory_space<vmem>>, vector<2x128xf32>,
    return
  }
}

</mosaic_0001>

<llo_original>
// kernel: dense_net_forward.1
$region0: #{dense_net_forward.1}
  #allocation0 [shape = 'u32[]', space=smem, size = 0x4, offset = 0x4, fixed_abs, tag = 'smem constant byte address 0x4 - core index']
  #allocation1 [shape = 'u32[144,128]{1,0:T(1,128)}', space=vmem, size = 0x12000, scoped, tag = 'internal scratch']
  %s0 = inlined_call_operand.vmem [shape: f32[2,128], index: 0, kind: input, shape index: {}]
  %s1 = inlined_call_operand.hbm [shape: f32[408,128], index: 1, kind: input, shape index: {}]
  %s2 = inlined_call_operand.hbm [shape: f32[2,128], index: 2, kind: output, shape index: {}]
  %s3 = sld [smem:[#allocation0]]
  $region22: #{dense_net_forward.1} parent=0
    _
  %s5 = ssub.s32 1, %s3
  %s6 = scalar_select 0, %s5, %s3
  $region1: #{dense_net_forward.1} parent=0
    #allocation2 [shape = 'u8[208896]{0}', space=vmem, size = 0x33000, scoped, tag = 'input window, operand 1, single buffered']
    #allocation3 [shape = 's32[1]{0}', space=sflag, size = 0x4, scoped, tag = 'scoped memory for dense_net_forward.1']
    #allocation4 [shape = 's32[1]{0}', space=sflag, size = 0x4, scoped, tag = 'scoped memory for dense_net_forward.1']
    #allocation5 [shape = 'u8[1024]{0}', space=vmem, size = 0x400, scoped, tag = 'output window, operand 0, single buffered']
    %7 = vsyncpa [#allocation3], 0
    %8 = vsyncpa [#allocation4], 0
    // Predicated region
    $region2: #{dense_net_forward.1} parent=1 // pred_check
      _
    $region3: #{dense_net_forward.1} parent=1 // pred_check_branch
      %10 = sbr.rel (0) target = $region5
    $region4: #{dense_net_forward.1} parent=1 // pred_region
      _
    $region5: #{dense_net_forward.1} parent=1 // pred_fallthru
      _
    // Predicated region
    $region6: #{dense_net_forward.1} parent=1 // pred_check
      _
    $region7: #{dense_net_forward.1} parent=1 // pred_check_branch
      %12 = sbr.rel (0) target = $region9
    $region8: #{dense_net_forward.1} parent=1 // pred_region
      %s14 = ssub.s32 6528, 6528
      %15 = vsyncadd [#allocation3], %s14
      %s16 = sshll.u32 [#allocation2], 4
      %s17 = int_to_ptr.vmem [resolvable:$true] %s16
      %22 = dma.hbm_to_vmem [thread:$0]  %s1, 6528, %s17, [#allocation3], 128, 128, 8
    $region9: #{dense_net_forward.1} parent=1 // pred_fallthru
      _
    // Predicated region
    $region10: #{dense_net_forward.1} parent=1 // pred_check
      _
    $region11: #{dense_net_forward.1} parent=1 // pred_check_branch
      %24 = sbr.rel (0) target = $region13
    $region12: #{dense_net_forward.1} parent=1 // pred_region
      %25 = dma.done [#allocation3], 6528
    $region13: #{dense_net_forward.1} parent=1 // pred_fallthru
      _
    %v26 = vld [vmem:[%s0] sm:$0x3]
    %v27 = vld [vmem:[#allocation2] sm:$0x1]
    %v28 = vld [vmem:[#allocation2 + $0x8] sm:$0xff]
    %v29 = vld [vmem:[#allocation2 + $0x10] sm:$0xff]
    %v30 = vld [vmem:[#allocation2 + $0x18] sm:$0xff]
    %v31 = vld [vmem:[#allocation2 + $0x20] sm:$0xff]
    %v32 = vld [vmem:[#allocation2 + $0x28] sm:$0xff]
    %v33 = vld [vmem:[#allocation2 + $0x30] sm:$0xff]
    %v34 = vld [vmem:[#allocation2 + $0x38] sm:$0xff]
    %v35 = vld [vmem:[#allocation2 + $0x40] sm:$0xff]
    %v36 = vld [vmem:[#allocation2 + $0x48] sm:$0xff]
    %v37 = vld [vmem:[#allocation2 + $0x50] sm:$0xff]
    %v38 = vld [vmem:[#allocation2 + $0x58] sm:$0xff]
    %v39 = vld [vmem:[#allocation2 + $0x60] sm:$0xff]
    %v40 = vld [vmem:[#allocation2 + $0x68] sm:$0xff]
    %v41 = vld [vmem:[#allocation2 + $0x70] sm:$0xff]
    %v42 = vld [vmem:[#allocation2 + $0x78] sm:$0xff]
    %v43 = vld [vmem:[#allocation2 + $0x80] sm:$0xff]
    %v44 = vlaneseq
    %v45 = vshrl.u32 %v44, 7
    %v46 = vsub.s32 0, %v45
    %v47 = vrot.slane %v27, %v46
    %48 = vmatprep.subr.mxu0 0.0
    %49 = vmatpush1.msra.mxu0 %v28
    %50 = vmatprep.subr.mxu0 0.0
    %51 = vmatpush1.msra.mxu0 %v29
    %52 = vmatprep.subr.mxu0 0.0
    %53 = vmatpush1.msra.mxu0 %v30
    %54 = vmatprep.subr.mxu0 0.0
    %55 = vmatpush1.msra.mxu0 %v31
    %56 = vmatprep.subr.mxu0 0.0
    %57 = vmatpush1.msra.mxu0 %v32
    %58 = vmatprep.subr.mxu0 0.0
    %59 = vmatpush1.msra.mxu0 %v33
    %60 = vmatprep.subr.mxu0 0.0
    %61 = vmatpush1.msra.mxu0 %v34
    %62 = vmatprep.subr.mxu0 0.0
    %63 = vmatpush1.msra.mxu0 %v35
    %64 = vmatprep.subr.mxu0 0.0
    %65 = vmatpush1.msra.mxu0 %v36
    %66 = vmatprep.subr.mxu0 0.0
    %67 = vmatpush1.msra.mxu0 %v37
    %68 = vmatprep.subr.mxu0 0.0
    %69 = vmatpush1.msra.mxu0 %v38
    %70 = vmatprep.subr.mxu0 0.0
    %71 = vmatpush1.msra.mxu0 %v39
    %72 = vmatprep.subr.mxu0 0.0
    %73 = vmatpush1.msra.mxu0 %v40
    %74 = vmatprep.subr.mxu0 0.0
    %75 = vmatpush1.msra.mxu0 %v41
    %76 = vmatprep.subr.mxu0 0.0
    %77 = vmatpush1.msra.mxu0 %v42
    %78 = vmatprep.subr.mxu0 0.0
    %79 = vmatpush1.msra.mxu0 %v43
    %80 = vmatprep.subr.mxu0 0.0
    %81 = vmatpush1.msra.mxu0 0.0
    %82 = vmatprep.subr.mxu0 0.0
    %83 = vmatpush1.msra.mxu0 0.0
    %84 = vmatprep.subr.mxu0 0.0
    %85 = vmatpush1.msra.mxu0 0.0
    %86 = vmatprep.subr.mxu0 0.0
    %87 = vmatpush1.msra.mxu0 0.0
    %88 = vmatprep.subr.mxu0 0.0
    %89 = vmatpush1.msra.mxu0 0.0
    %90 = vmatprep.subr.mxu0 0.0
    %91 = vmatpush1.msra.mxu0 0.0
    %92 = vmatprep.subr.mxu0 0.0
    %93 = vmatpush1.msra.mxu0 0.0
    %94 = vmatprep.subr.mxu0 0.0
    %95 = vmatpush1.msra.mxu0 0.0
    %96 = vmatprep.subr.mxu0 0.0
    %97 = vmatpush1.msra.mxu0 0.0
    %98 = vmatprep.subr.mxu0 0.0
    %99 = vmatpush1.msra.mxu0 0.0
    %100 = vmatprep.subr.mxu0 0.0
    %101 = vmatpush1.msra.mxu0 0.0
    %102 = vmatprep.subr.mxu0 0.0
    %103 = vmatpush1.msra.mxu0 0.0
    %104 = vmatprep.subr.mxu0 0.0
    %105 = vmatpush1.msra.mxu0 0.0
    %106 = vmatprep.subr.mxu0 0.0
    %107 = vmatpush1.msra.mxu0 0.0
    %108 = vmatprep.subr.mxu0 0.0
    %109 = vmatpush1.msra.mxu0 0.0
    %110 = vmatprep.subr.mxu0 0.0
    %111 = vmatpush1.msra.mxu0 0.0
    %112 = vmatprep.mubr.f32.mxu0 0.0
    %113 = vmatmul.mubr.f32.gmra.mrb[0].mxu0 %v26
    %v114 = vpop.f32.mrb[0].mxu0
    %v115 = vadd.f32 %v47, %v114
    %v116 = vpop.f32.mrb[0].mxu0
    %117 = vdwg.mxu0
    %v118 = vmax.f32 %v115, 0.0
    %v119 = vld [vmem:[#allocation2 + $0x88] sm:$0x1]
    %v120 = vld [vmem:[#allocation2 + $0x90] sm:$0xff]
    %v121 = vld [vmem:[#allocation2 + $0x98] sm:$0xff]
    %v122 = vld [vmem:[#allocation2 + $0xa0] sm:$0xff]
    %v123 = vld [vmem:[#allocation2 + $0xa8] sm:$0xff]
    %v124 = vld [vmem:[#allocation2 + $0xb0] sm:$0xff]
    %v125 = vld [vmem:[#allocation2 + $0xb8] sm:$0xff]
    %v126 = vld [vmem:[#allocation2 + $0xc0] sm:$0xff]
    %v127 = vld [vmem:[#allocation2 + $0xc8] sm:$0xff]
    %v128 = vld [vmem:[#allocation2 + $0xd0] sm:$0xff]
    %v129 = vld [vmem:[#allocation2 + $0xd8] sm:$0xff]
    %v130 = vld [vmem:[#allocation2 + $0xe0] sm:$0xff]
    %v131 = vld [vmem:[#allocation2 + $0xe8] sm:$0xff]
    %v132 = vld [vmem:[#allocation2 + $0xf0] sm:$0xff]
    %v133 = vld [vmem:[#allocation2 + $0xf8] sm:$0xff]
    %v134 = vld [vmem:[#allocation2 + $0x100] sm:$0xff]
    %v135 = vld [vmem:[#allocation2 + $0x108] sm:$0xff]
    %v136 = vlaneseq
    %v137 = vshrl.u32 %v136, 7
    %v138 = vsub.s32 0, %v137
    %v139 = vrot.slane %v119, %v138
    %140 = vmatprep.subr.mxu0 0.0
    %141 = vmatpush1.msra.mxu0 %v120
    %142 = vmatprep.subr.mxu0 0.0
    %143 = vmatpush1.msra.mxu0 %v121
    %144 = vmatprep.subr.mxu0 0.0
    %145 = vmatpush1.msra.mxu0 %v122
    %146 = vmatprep.subr.mxu0 0.0
    %147 = vmatpush1.msra.mxu0 %v123
    %148 = vmatprep.subr.mxu0 0.0
    %149 = vmatpush1.msra.mxu0 %v124
    %150 = vmatprep.subr.mxu0 0.0
    %151 = vmatpush1.msra.mxu0 %v125
    %152 = vmatprep.subr.mxu0 0.0
    %153 = vmatpush1.msra.mxu0 %v126
    %154 = vmatprep.subr.mxu0 0.0
    %155 = vmatpush1.msra.mxu0 %v127
    %156 = vmatprep.subr.mxu0 0.0
    %157 = vmatpush1.msra.mxu0 %v128
    %158 = vmatprep.subr.mxu0 0.0
    %159 = vmatpush1.msra.mxu0 %v129
    %160 = vmatprep.subr.mxu0 0.0
    %161 = vmatpush1.msra.mxu0 %v130
    %162 = vmatprep.subr.mxu0 0.0
    %163 = vmatpush1.msra.mxu0 %v131
    %164 = vmatprep.subr.mxu0 0.0
    %165 = vmatpush1.msra.mxu0 %v132
    %166 = vmatprep.subr.mxu0 0.0
    %167 = vmatpush1.msra.mxu0 %v133
    %168 = vmatprep.subr.mxu0 0.0
    %169 = vmatpush1.msra.mxu0 %v134
    %170 = vmatprep.subr.mxu0 0.0
    %171 = vmatpush1.msra.mxu0 %v135
    %172 = vmatprep.subr.mxu0 0.0
    %173 = vmatpush1.msra.mxu0 0.0
    %174 = vmatprep.subr.mxu0 0.0
    %175 = vmatpush1.msra.mxu0 0.0
    %176 = vmatprep.subr.mxu0 0.0
    %177 = vmatpush1.msra.mxu0 0.0
    %178 = vmatprep.subr.mxu0 0.0
    %179 = vmatpush1.msra.mxu0 0.0
    %180 = vmatprep.subr.mxu0 0.0
    %181 = vmatpush1.msra.mxu0 0.0
    %182 = vmatprep.subr.mxu0 0.0
    %183 = vmatpush1.msra.mxu0 0.0
    %184 = vmatprep.subr.mxu0 0.0
    %185 = vmatpush1.msra.mxu0 0.0
    %186 = vmatprep.subr.mxu0 0.0
    %187 = vmatpush1.msra.mxu0 0.0
    %188 = vmatprep.subr.mxu0 0.0
    %189 = vmatpush1.msra.mxu0 0.0
    %190 = vmatprep.subr.mxu0 0.0
    %191 = vmatpush1.msra.mxu0 0.0
    %192 = vmatprep.subr.mxu0 0.0
    %193 = vmatpush1.msra.mxu0 0.0
    %194 = vmatprep.subr.mxu0 0.0
    %195 = vmatpush1.msra.mxu0 0.0
    %196 = vmatprep.subr.mxu0 0.0
    %197 = vmatpush1.msra.mxu0 0.0
    %198 = vmatprep.subr.mxu0 0.0
    %199 = vmatpush1.msra.mxu0 0.0
    %200 = vmatprep.subr.mxu0 0.0
    %201 = vmatpush1.msra.mxu0 0.0
    %202 = vmatprep.subr.mxu0 0.0
    %203 = vmatpush1.msra.mxu0 0.0
    %204 = vmatprep.mubr.f32.mxu0 0.0
    %205 = vmatmul.mubr.f32.gmra.mrb[0].mxu0 %v118
    %v206 = vpop.f32.mrb[0].mxu0
    %v207 = vadd.f32 %v139, %v206
    %v208 = vpop.f32.mrb[0].mxu0
    %209 = vdwg.mxu0
    %v210 = vmax.f32 %v207, 0.0
    %v211 = vld [vmem:[#allocation2 + $0x110] sm:$0x1]
    %v212 = vld [vmem:[#allocation2 + $0x118] sm:$0xff]
    %v213 = vld [vmem:[#allocation2 + $0x120] sm:$0xff]
    %v214 = vld [vmem:[#allocation2 + $0x128] sm:$0xff]
    %v215 = vld [vmem:[#allocation2 + $0x130] sm:$0xff]
    %v216 = vld [vmem:[#allocation2 + $0x138] sm:$0xff]
    %v217 = vld [vmem:[#allocation2 + $0x140] sm:$0xff]
    %v218 = vld [vmem:[#allocation2 + $0x148] sm:$0xff]
    %v219 = vld [vmem:[#allocation2 + $0x150] sm:$0xff]
    %v220 = vld [vmem:[#allocation2 + $0x158] sm:$0xff]
    %v221 = vld [vmem:[#allocation2 + $0x160] sm:$0xff]
    %v222 = vld [vmem:[#allocation2 + $0x168] sm:$0xff]
    %v223 = vld [vmem:[#allocation2 + $0x170] sm:$0xff]
    %v224 = vld [vmem:[#allocation2 + $0x178] sm:$0xff]
    %v225 = vld [vmem:[#allocation2 + $0x180] sm:$0xff]
    %v226 = vld [vmem:[#allocation2 + $0x188] sm:$0xff]
    %v227 = vld [vmem:[#allocation2 + $0x190] sm:$0xff]
    %v228 = vlaneseq
    %v229 = vshrl.u32 %v228, 7
    %v230 = vsub.s32 0, %v229
    %v231 = vrot.slane %v211, %v230
    %232 = vmatprep.subr.mxu0 0.0
    %233 = vmatpush1.msra.mxu0 %v212
    %234 = vmatprep.subr.mxu0 0.0
    %235 = vmatpush1.msra.mxu0 %v213
    %236 = vmatprep.subr.mxu0 0.0
    %237 = vmatpush1.msra.mxu0 %v214
    %238 = vmatprep.subr.mxu0 0.0
    %239 = vmatpush1.msra.mxu0 %v215
    %240 = vmatprep.subr.mxu0 0.0
    %241 = vmatpush1.msra.mxu0 %v216
    %242 = vmatprep.subr.mxu0 0.0
    %243 = vmatpush1.msra.mxu0 %v217
    %244 = vmatprep.subr.mxu0 0.0
    %245 = vmatpush1.msra.mxu0 %v218
    %246 = vmatprep.subr.mxu0 0.0
    %247 = vmatpush1.msra.mxu0 %v219
    %248 = vmatprep.subr.mxu0 0.0
    %249 = vmatpush1.msra.mxu0 %v220
    %250 = vmatprep.subr.mxu0 0.0
    %251 = vmatpush1.msra.mxu0 %v221
    %252 = vmatprep.subr.mxu0 0.0
    %253 = vmatpush1.msra.mxu0 %v222
    %254 = vmatprep.subr.mxu0 0.0
    %255 = vmatpush1.msra.mxu0 %v223
    %256 = vmatprep.subr.mxu0 0.0
    %257 = vmatpush1.msra.mxu0 %v224
    %258 = vmatprep.subr.mxu0 0.0
    %259 = vmatpush1.msra.mxu0 %v225
    %260 = vmatprep.subr.mxu0 0.0
    %261 = vmatpush1.msra.mxu0 %v226
    %262 = vmatprep.subr.mxu0 0.0
    %263 = vmatpush1.msra.mxu0 %v227
    %264 = vmatprep.subr.mxu0 0.0
    %265 = vmatpush1.msra.mxu0 0.0
    %266 = vmatprep.subr.mxu0 0.0
    %267 = vmatpush1.msra.mxu0 0.0
    %268 = vmatprep.subr.mxu0 0.0
    %269 = vmatpush1.msra.mxu0 0.0
    %270 = vmatprep.subr.mxu0 0.0
    %271 = vmatpush1.msra.mxu0 0.0
    %272 = vmatprep.subr.mxu0 0.0
    %273 = vmatpush1.msra.mxu0 0.0
    %274 = vmatprep.subr.mxu0 0.0
    %275 = vmatpush1.msra.mxu0 0.0
    %276 = vmatprep.subr.mxu0 0.0
    %277 = vmatpush1.msra.mxu0 0.0
    %278 = vmatprep.subr.mxu0 0.0
    %279 = vmatpush1.msra.mxu0 0.0
    %280 = vmatprep.subr.mxu0 0.0
    %281 = vmatpush1.msra.mxu0 0.0
    %282 = vmatprep.subr.mxu0 0.0
    %283 = vmatpush1.msra.mxu0 0.0
    %284 = vmatprep.subr.mxu0 0.0
    %285 = vmatpush1.msra.mxu0 0.0
    %286 = vmatprep.subr.mxu0 0.0
    %287 = vmatpush1.msra.mxu0 0.0
    %288 = vmatprep.subr.mxu0 0.0
    %289 = vmatpush1.msra.mxu0 0.0
    %290 = vmatprep.subr.mxu0 0.0
    %291 = vmatpush1.msra.mxu0 0.0
    %292 = vmatprep.subr.mxu0 0.0
    %293 = vmatpush1.msra.mxu0 0.0
    %294 = vmatprep.subr.mxu0 0.0
    %295 = vmatpush1.msra.mxu0 0.0
    %296 = vmatprep.mubr.f32.mxu0 0.0
    %297 = vmatmul.mubr.f32.gmra.mrb[0].mxu0 %v210
    %v298 = vpop.f32.mrb[0].mxu0
    %v299 = vadd.f32 %v231, %v298
    %v300 = vpop.f32.mrb[0].mxu0
    %301 = vdwg.mxu0
    %302 = vst [vmem:[#allocation5] sm:$0x3] %v299
    // Predicated region
    $region14: #{dense_net_forward.1} parent=1 // pred_check
      _
    $region15: #{dense_net_forward.1} parent=1 // pred_check_branch
      %304 = sbr.rel (0) target = $region17
    $region16: #{dense_net_forward.1} parent=1 // pred_region
      %s306 = ssub.s32 32, 32
      %307 = vsyncadd [#allocation4], %s306
      %s309 = sshll.u32 [#allocation5], 4
      %s310 = int_to_ptr.vmem [resolvable:$true] %s309
      %312 = dma.vmem_to_hbm [thread:$0]  %s310, 32, %s2, [#allocation4]
    $region17: #{dense_net_forward.1} parent=1 // pred_fallthru
      _
    // Predicated region
    $region18: #{dense_net_forward.1} parent=1 // pred_check
      _
    $region19: #{dense_net_forward.1} parent=1 // pred_check_branch
      %314 = sbr.rel (0) target = $region21
    $region20: #{dense_net_forward.1} parent=1 // pred_region
      %315 = dma.done [#allocation4], 32
    $region21: #{dense_net_forward.1} parent=1 // pred_fallthru
      _
    %316 = vsyncpa [#allocation3], 1
    %317 = vsyncpa [#allocation4], 1

</llo_original>
